<compile_context>
chip_gen: v5e
topology: v5e:2x2
jax: 0.10.0
libtpu: 0.0.40
codegen_flags: <defaults>
</compile_context>

<pallas_src>
import functools

import jax
import jax.numpy as jnp
from jax.experimental import pallas as pl
from jax.experimental.pallas import tpu as pltpu


# ----------------------------------------------------------------------------
# Single fused kernel: whole-sequence input projection + unrolled LSTM + MLP.
# ----------------------------------------------------------------------------
def fused_forward_kernel(x_ref, w_ih_ref, w_hh_ref, h0_ref, c0_ref, *rest,
                         seq_len, batch, hidden, num_linear):
    """rest = [W_0, b_0, ..., W_{L-1}, b_{L-1}, out_ref, hn_ref, cn_ref].

    x_ref is time-major flattened: row t*B + b  ->  features[b, t, :].
    """
    lin_refs = rest[:2 * num_linear]
    out_ref, hn_ref, cn_ref = rest[2 * num_linear:]
    H, B = hidden, batch

    # --- All timesteps' input projections in one MXU matmul (off the serial
    # --- critical path of the recurrence): (T*B, F) @ (F, 4H) -> (T*B, 4H).
    x_proj = jnp.dot(x_ref[...], w_ih_ref[...],
                     preferred_element_type=jnp.float32)

    w_hh = w_hh_ref[...]                 # (H, 4H): loaded once, reused each step
    h = h0_ref[...]                      # (B, H) f32 carry
    c = c0_ref[...]                      # (B, H) f32 carry

    # Fully unrolled recurrence (T static): the data dependence forbids overlap
    # anyway, and unrolling lets the LLO scheduler pack slots across timesteps.
    for t in range(seq_len):
        # Contiguous, sublane-tile-aligned slice (t*B is a static multiple of 8).
        gates = x_proj[t * B:(t + 1) * B, :] + jnp.dot(
            h, w_hh, preferred_element_type=jnp.float32)        # (B, 4H)
        # 4H == 128 lanes == one vreg: one full-width sigmoid pass (i, f, o
        # lanes used) + one tanh pass for g  ->  2 EUP pushes/step, not 4.
        sig = jax.nn.sigmoid(gates)
        i_g = sig[:, 0 * H:1 * H]
        f_g = sig[:, 1 * H:2 * H]
        o_g = sig[:, 3 * H:4 * H]
        g_g = jnp.tanh(gates[:, 2 * H:3 * H])
        c = f_g * c + i_g * g_g
        h = o_g * jnp.tanh(c)

    hn_ref[...] = h
    cn_ref[...] = c

    # Backbone: Linear + ReLU per layer, fused into the same kernel invocation.
    out = h
    for l in range(num_linear):
        w = lin_refs[2 * l][...]
        b = lin_refs[2 * l + 1][...]
        out = jnp.maximum(
            jnp.dot(out, w, preferred_element_type=jnp.float32) + b, 0.0)
    out_ref[...] = out
    # (Packing out/h_n/c_n into one 128-lane output slab would still be a
    #  masked 96-lane store at H=32, so the lane-dense-output trick is a wash
    #  here; kept as three outputs.)


# ----------------------------------------------------------------------------
# Full forward: one gridless pallas_call, everything VMEM-resident (< 100 KB).
# ----------------------------------------------------------------------------
def network_forward(features, hidden_state, params):
    h0, c0 = hidden_state                       # each (1, B, H)
    B, T, F = features.shape
    H = params["w_hh"].shape[0]
    backbone = params["backbone"]
    L = len(backbone)
    dout = backbone[-1][0].shape[1] if L else H

    # Time-major flatten once (tiny copy, outside the serial recurrence), so the
    # kernel's per-step reads are contiguous static slices instead of strided.
    x_tm = jnp.transpose(features, (1, 0, 2)).reshape(T * B, F)
    flat_lin = [a for wb in backbone for a in wb]

    kernel = functools.partial(fused_forward_kernel,
                               seq_len=T, batch=B, hidden=H, num_linear=L)
    out_shapes = (jax.ShapeDtypeStruct((B, dout), jnp.float32),   # backbone(out[:, -1])
                  jax.ShapeDtypeStruct((B, H), jnp.float32),      # h_n
                  jax.ShapeDtypeStruct((B, H), jnp.float32))      # c_n

    # Whole-array VMEM blocks, stated explicitly (no ANY-space surprises).
    vmem_spec = pl.BlockSpec(memory_space=pltpu.MemorySpace.VMEM)
    n_inputs = 5 + 2 * L

    out, h_n, c_n = pl.pallas_call(
        kernel,
        out_shape=out_shapes,
        in_specs=[vmem_spec] * n_inputs,
        out_specs=(vmem_spec, vmem_spec, vmem_spec),
    )(x_tm, params["w_ih"], params["w_hh"], h0[0], c0[0], *flat_lin)

    # TODO(synk): on v7x (2 TensorCores) with large batches, shard independent
    # sequences across cores via a leading "parallel" batch grid axis; not
    # worthwhile at these toy shapes.
    return [out, (h_n[None, ...], c_n[None, ...])]


# ----------------------------------------------------------------------------
# Pure-JAX reference for sanity checking (PyTorch (i,f,g,o) gate convention).
# ----------------------------------------------------------------------------
def reference_forward(features, hidden_state, params):
    h0, c0 = hidden_state
    h, c = h0[0], c0[0]
    H = h.shape[1]
    x_tbf = jnp.transpose(features, (1, 0, 2))

    def step(carry, x_t):
        h, c = carry
        gates = x_t @ params["w_ih"] + h @ params["w_hh"]
        i = jax.nn.sigmoid(gates[:, 0 * H:1 * H])
        f = jax.nn.sigmoid(gates[:, 1 * H:2 * H])
        g = jnp.tanh(gates[:, 2 * H:3 * H])
        o = jax.nn.sigmoid(gates[:, 3 * H:4 * H])
        c = f * c + i * g
        h = o * jnp.tanh(c)
        return (h, c), None

    (h, c), _ = jax.lax.scan(step, (h, c), x_tbf)
    out = h
    for (w, b) in params["backbone"]:
        out = jnp.maximum(out @ w + b, 0.0)
    return [out, (h[None, ...], c[None, ...])]


# ----------------------------------------------------------------------------
# Deterministic parameter construction (mirrors __init__ shapes).
# Weights are produced kernel-ready (transposed vs. torch); nothing is
# re-packed / concatenated per forward call.
# ----------------------------------------------------------------------------
def make_params(key, features_dim, net_arch):
    H = net_arch[0]
    k_ih, k_hh, key = jax.random.split(key, 3)
    bound = 1.0 / jnp.sqrt(H)
    params = {
        # stored transposed vs. torch: (F, 4H) and (H, 4H), gate order (i,f,g,o)
        "w_ih": jax.random.uniform(k_ih, (features_dim, 4 * H),
                                   minval=-bound, maxval=bound,
                                   dtype=jnp.float32),
        "w_hh": jax.random.uniform(k_hh, (H, 4 * H),
                                   minval=-bound, maxval=bound,
                                   dtype=jnp.float32),
        "backbone": [],
    }
    din = H
    for dout in net_arch[1:]:
        kw, kb, key = jax.random.split(key, 3)
        lim = 1.0 / jnp.sqrt(din)
        w = jax.random.uniform(kw, (din, dout), minval=-lim, maxval=lim,
                               dtype=jnp.float32)
        b = jax.random.uniform(kb, (1, dout), minval=-lim, maxval=lim,
                               dtype=jnp.float32)
        params["backbone"].append((w, b))
        din = dout
    return params


if __name__ == "__main__":
    # Small shapes consistent with the module's forward.  B=8 fills all 8
    # vreg sublanes / MXU rows (B=2 would leave 75% padding).
    B, T = 8, 8                  # batch, sequence length
    features_dim = 16
    net_arch = [32, 32]          # LSTM hidden = 32, one Linear(32 -> 32) + ReLU

    key = jax.random.PRNGKey(0)
    k_x, k_h, k_c, k_p = jax.random.split(key, 4)

    features = jax.random.normal(k_x, (B, T, features_dim), dtype=jnp.float32)
    h0 = jax.random.normal(k_h, (1, B, net_arch[0]), dtype=jnp.float32)
    c0 = jax.random.normal(k_c, (1, B, net_arch[0]), dtype=jnp.float32)
    params = make_params(k_p, features_dim, net_arch)

    fwd = jax.jit(network_forward)   # folds the tiny time-major copy into one dispatch
    out, (h_n, c_n) = fwd(features, (h0, c0), params)
    jax.block_until_ready(out)
    jax.block_until_ready(h_n)
    jax.block_until_ready(c_n)

    # Sanity check against a pure-JAX reference.
    ref_out, (ref_h, ref_c) = reference_forward(features, (h0, c0), params)
    assert jnp.allclose(out, ref_out, atol=2e-3, rtol=2e-3)
    assert jnp.allclose(h_n, ref_h, atol=2e-3, rtol=2e-3)
    assert jnp.allclose(c_n, ref_c, atol=2e-3, rtol=2e-3)

    print("KERNEL_OK")
</pallas_src>

<mosaic_0001>
module attributes {stable_mosaic.version = 11 : i64} {
  func.func @fused_forward_kernel(%arg0: memref<64x16xf32, #tpu.memory_space<vmem>>, %arg1: memref<16x128xf32, #tpu.memory_space<vmem>>, %arg2: memref<32x128xf32, #tpu.memory_space<vmem>>, %arg3: memref<8x32xf32, #tpu.memory_space<vmem>>, %arg4: memref<8x32xf32, #tpu.memory_space<vmem>>, %arg5: memref<32x32xf32, #tpu.memory_space<vmem>>, %arg6: memref<1x32xf32, #tpu.memory_space<vmem>>, %arg7: memref<8x32xf32, #tpu.memory_space<vmem>>, %arg8: memref<8x32xf32, #tpu.memory_space<vmem>>, %arg9: memref<8x32xf32, #tpu.memory_space<vmem>>) attributes {dimension_semantics = [], scalar_prefetch = 0 : i64, scratch_operands = 0 : i64, tpu.core_type = #tpu.core_type<tc>} {
    %c0 = arith.constant 0 : index
    %c0_0 = arith.constant 0 : index
    %0 = vector.load %arg0[%c0, %c0_0] : memref<64x16xf32, #tpu.memory_space<vmem>>, vector<64x16xf32>
    %c0_1 = arith.constant 0 : index
    %c0_2 = arith.constant 0 : index
    %1 = vector.load %arg1[%c0_1, %c0_2] : memref<16x128xf32, #tpu.memory_space<vmem>>, vector<16x128xf32>
    %cst = arith.constant dense<0.000000e+00> : vector<64x128xf32>
    %2 = tpu.matmul %0, %1, %cst {dimension_numbers = #tpu.dot_dimension_numbers<[1], [0], [0], [1], [0, 0, 1, 1], [], []>} : vector<64x16xf32>, vector<16x128xf32>, vector<64x128xf32> -> vector<64x128xf32>
    %c0_3 = arith.constant 0 : index
    %c0_4 = arith.constant 0 : index
    %3 = vector.load %arg2[%c0_3, %c0_4] : memref<32x128xf32, #tpu.memory_space<vmem>>, vector<32x128xf32>
    %c0_5 = arith.constant 0 : index
    %c0_6 = arith.constant 0 : index
    %4 = vector.load %arg3[%c0_5, %c0_6] : memref<8x32xf32, #tpu.memory_space<vmem>>, vector<8x32xf32>
    %c0_7 = arith.constant 0 : index
    %c0_8 = arith.constant 0 : index
    %5 = vector.load %arg4[%c0_7, %c0_8] : memref<8x32xf32, #tpu.memory_space<vmem>>, vector<8x32xf32>
    %6 = vector.extract_strided_slice %2 {offsets = [0, 0], sizes = [8, 128], strides = [1, 1]} : vector<64x128xf32> to vector<8x128xf32>
    %cst_9 = arith.constant dense<0.000000e+00> : vector<8x128xf32>
    %7 = tpu.matmul %4, %3, %cst_9 {dimension_numbers = #tpu.dot_dimension_numbers<[1], [0], [0], [1], [0, 0, 1, 1], [], []>} : vector<8x32xf32>, vector<32x128xf32>, vector<8x128xf32> -> vector<8x128xf32>
    %8 = arith.addf %6, %7 : vector<8x128xf32>
    %9 = arith.negf %8 : vector<8x128xf32>
    %10 = math.exp %9 : vector<8x128xf32>
    %cst_10 = arith.constant 1.000000e+00 : f32
    %11 = vector.broadcast %cst_10 : f32 to vector<8x128xf32>
    %12 = arith.addf %11, %10 : vector<8x128xf32>
    %13 = arith.divf %11, %12 : vector<8x128xf32>
    %14 = vector.extract_strided_slice %13 {offsets = [0, 0], sizes = [8, 32], strides = [1, 1]} : vector<8x128xf32> to vector<8x32xf32>
    %15 = vector.extract_strided_slice %13 {offsets = [0, 32], sizes = [8, 32], strides = [1, 1]} : vector<8x128xf32> to vector<8x32xf32>
    %16 = vector.extract_strided_slice %13 {offsets = [0, 96], sizes = [8, 32], strides = [1, 1]} : vector<8x128xf32> to vector<8x32xf32>
    %17 = vector.extract_strided_slice %8 {offsets = [0, 64], sizes = [8, 32], strides = [1, 1]} : vector<8x128xf32> to vector<8x32xf32>
    %18 = math.tanh %17 : vector<8x32xf32>
    %19 = arith.mulf %15, %5 : vector<8x32xf32>
    %20 = arith.mulf %14, %18 : vector<8x32xf32>
    %21 = arith.addf %19, %20 : vector<8x32xf32>
    %22 = math.tanh %21 : vector<8x32xf32>
    %23 = arith.mulf %16, %22 : vector<8x32xf32>
    %24 = vector.extract_strided_slice %2 {offsets = [8, 0], sizes = [8, 128], strides = [1, 1]} : vector<64x128xf32> to vector<8x128xf32>
    %cst_11 = arith.constant dense<0.000000e+00> : vector<8x128xf32>
    %25 = tpu.matmul %23, %3, %cst_11 {dimension_numbers = #tpu.dot_dimension_numbers<[1], [0], [0], [1], [0, 0, 1, 1], [], []>} : vector<8x32xf32>, vector<32x128xf32>, vector<8x128xf32> -> vector<8x128xf32>
    %26 = arith.addf %24, %25 : vector<8x128xf32>
    %27 = arith.negf %26 : vector<8x128xf32>
    %28 = math.exp %27 : vector<8x128xf32>
    %cst_12 = arith.constant 1.000000e+00 : f32
    %29 = vector.broadcast %cst_12 : f32 to vector<8x128xf32>
    %30 = arith.addf %29, %28 : vector<8x128xf32>
    %31 = arith.divf %29, %30 : vector<8x128xf32>
    %32 = vector.extract_strided_slice %31 {offsets = [0, 0], sizes = [8, 32], strides = [1, 1]} : vector<8x128xf32> to vector<8x32xf32>
    %33 = vector.extract_strided_slice %31 {offsets = [0, 32], sizes = [8, 32], strides = [1, 1]} : vector<8x128xf32> to vector<8x32xf32>
    %34 = vector.extract_strided_slice %31 {offsets = [0, 96], sizes = [8, 32], strides = [1, 1]} : vector<8x128xf32> to vector<8x32xf32>
    %35 = vector.extract_strided_slice %26 {offsets = [0, 64], sizes = [8, 32], strides = [1, 1]} : vector<8x128xf32> to vector<8x32xf32>
    %36 = math.tanh %35 : vector<8x32xf32>
    %37 = arith.mulf %33, %21 : vector<8x32xf32>
    %38 = arith.mulf %32, %36 : vector<8x32xf32>
    %39 = arith.addf %37, %38 : vector<8x32xf32>
    %40 = math.tanh %39 : vector<8x32xf32>
    %41 = arith.mulf %34, %40 : vector<8x32xf32>
    %42 = vector.extract_strided_slice %2 {offsets = [16, 0], sizes = [8, 128], strides = [1, 1]} : vector<64x128xf32> to vector<8x128xf32>
    %cst_13 = arith.constant dense<0.000000e+00> : vector<8x128xf32>
    %43 = tpu.matmul %41, %3, %cst_13 {dimension_numbers = #tpu.dot_dimension_numbers<[1], [0], [0], [1], [0, 0, 1, 1], [], []>} : vector<8x32xf32>, vector<32x128xf32>, vector<8x128xf32> -> vector<8x128xf32>
    %44 = arith.addf %42, %43 : vector<8x128xf32>
    %45 = arith.negf %44 : vector<8x128xf32>
    %46 = math.exp %45 : vector<8x128xf32>
    %cst_14 = arith.constant 1.000000e+00 : f32
    %47 = vector.broadcast %cst_14 : f32 to vector<8x128xf32>
    %48 = arith.addf %47, %46 : vector<8x128xf32>
    %49 = arith.divf %47, %48 : vector<8x128xf32>
    %50 = vector.extract_strided_slice %49 {offsets = [0, 0], sizes = [8, 32], strides = [1, 1]} : vector<8x128xf32> to vector<8x32xf32>
    %51 = vector.extract_strided_slice %49 {offsets = [0, 32], sizes = [8, 32], strides = [1, 1]} : vector<8x128xf32> to vector<8x32xf32>
    %52 = vector.extract_strided_slice %49 {offsets = [0, 96], sizes = [8, 32], strides = [1, 1]} : vector<8x128xf32> to vector<8x32xf32>
    %53 = vector.extract_strided_slice %44 {offsets = [0, 64], sizes = [8, 32], strides = [1, 1]} : vector<8x128xf32> to vector<8x32xf32>
    %54 = math.tanh %53 : vector<8x32xf32>
    %55 = arith.mulf %51, %39 : vector<8x32xf32>
    %56 = arith.mulf %50, %54 : vector<8x32xf32>
    %57 = arith.addf %55, %56 : vector<8x32xf32>
    %58 = math.tanh %57 : vector<8x32xf32>
    %59 = arith.mulf %52, %58 : vector<8x32xf32>
    %60 = vector.extract_strided_slice %2 {offsets = [24, 0], sizes = [8, 128], strides = [1, 1]} : vector<64x128xf32> to vector<8x128xf32>
    %cst_15 = arith.constant dense<0.000000e+00> : vector<8x128xf32>
    %61 = tpu.matmul %59, %3, %cst_15 {dimension_numbers = #tpu.dot_dimension_numbers<[1], [0], [0], [1], [0, 0, 1, 1], [], []>} : vector<8x32xf32>, vector<32x128xf32>, vector<8x128xf32> -> vector<8x128xf32>
    %62 = arith.addf %60, %61 : vector<8x128xf32>
    %63 = arith.negf %62 : vector<8x128xf32>
    %64 = math.exp %63 : vector<8x128xf32>
    %cst_16 = arith.constant 1.000000e+00 : f32
    %65 = vector.broadcast %cst_16 : f32 to vector<8x128xf32>
    %66 = arith.addf %65, %64 : vector<8x128xf32>
    %67 = arith.divf %65, %66 : vector<8x128xf32>
    %68 = vector.extract_strided_slice %67 {offsets = [0, 0], sizes = [8, 32], strides = [1, 1]} : vector<8x128xf32> to vector<8x32xf32>
    %69 = vector.extract_strided_slice %67 {offsets = [0, 32], sizes = [8, 32], strides = [1, 1]} : vector<8x128xf32> to vector<8x32xf32>
    %70 = vector.extract_strided_slice %67 {offsets = [0, 96], sizes = [8, 32], strides = [1, 1]} : vector<8x128xf32> to vector<8x32xf32>
    %71 = vector.extract_strided_slice %62 {offsets = [0, 64], sizes = [8, 32], strides = [1, 1]} : vector<8x128xf32> to vector<8x32xf32>
    %72 = math.tanh %71 : vector<8x32xf32>
    %73 = arith.mulf %69, %57 : vector<8x32xf32>
    %74 = arith.mulf %68, %72 : vector<8x32xf32>
    %75 = arith.addf %73, %74 : vector<8x32xf32>
    %76 = math.tanh %75 : vector<8x32xf32>
    %77 = arith.mulf %70, %76 : vector<8x32xf32>
    %78 = vector.extract_strided_slice %2 {offsets = [32, 0], sizes = [8, 128], strides = [1, 1]} : vector<64x128xf32> to vector<8x128xf32>
    %cst_17 = arith.constant dense<0.000000e+00> : vector<8x128xf32>
    %79 = tpu.matmul %77, %3, %cst_17 {dimension_numbers = #tpu.dot_dimension_numbers<[1], [0], [0], [1], [0, 0, 1, 1], [], []>} : vector<8x32xf32>, vector<32x128xf32>, vector<8x128xf32> -> vector<8x128xf32>
    %80 = arith.addf %78, %79 : vector<8x128xf32>
    %81 = arith.negf %80 : vector<8x128xf32>
    %82 = math.exp %81 : vector<8x128xf32>
    %cst_18 = arith.constant 1.000000e+00 : f32
    %83 = vector.broadcast %cst_18 : f32 to vector<8x128xf32>
    %84 = arith.addf %83, %82 : vector<8x128xf32>
    %85 = arith.divf %83, %84 : vector<8x128xf32>
    %86 = vector.extract_strided_slice %85 {offsets = [0, 0], sizes = [8, 32], strides = [1, 1]} : vector<8x128xf32> to vector<8x32xf32>
    %87 = vector.extract_strided_slice %85 {offsets = [0, 32], sizes = [8, 32], strides = [1, 1]} : vector<8x128xf32> to vector<8x32xf32>
    %88 = vector.extract_strided_slice %85 {offsets = [0, 96], sizes = [8, 32], strides = [1, 1]} : vector<8x128xf32> to vector<8x32xf32>
    %89 = vector.extract_strided_slice %80 {offsets = [0, 64], sizes = [8, 32], strides = [1, 1]} : vector<8x128xf32> to vector<8x32xf32>
    %90 = math.tanh %89 : vector<8x32xf32>
    %91 = arith.mulf %87, %75 : vector<8x32xf32>
    %92 = arith.mulf %86, %90 : vector<8x32xf32>
    %93 = arith.addf %91, %92 : vector<8x32xf32>
    %94 = math.tanh %93 : vector<8x32xf32>
    %95 = arith.mulf %88, %94 : vector<8x32xf32>
    %96 = vector.extract_strided_slice %2 {offsets = [40, 0], sizes = [8, 128], strides = [1, 1]} : vector<64x128xf32> to vector<8x128xf32>
    %cst_19 = arith.constant dense<0.000000e+00> : vector<8x128xf32>
    %97 = tpu.matmul %95, %3, %cst_19 {dimension_numbers = #tpu.dot_dimension_numbers<[1], [0], [0], [1], [0, 0, 1, 1], [], []>} : vector<8x32xf32>, vector<32x128xf32>, vector<8x128xf32> -> vector<8x128xf32>
    %98 = arith.addf %96, %97 : vector<8x128xf32>
    %99 = arith.negf %98 : vector<8x128xf32>
    %100 = math.exp %99 : vector<8x128xf32>
    %cst_20 = arith.constant 1.000000e+00 : f32
    %101 = vector.broadcast %cst_20 : f32 to vector<8x128xf32>
    %102 = arith.addf %101, %100 : vector<8x128xf32>
    %103 = arith.divf %101, %102 : vector<8x128xf32>
    %104 = vector.extract_strided_slice %103 {offsets = [0, 0], sizes = [8, 32], strides = [1, 1]} : vector<8x128xf32> to vector<8x32xf32>
    %105 = vector.extract_strided_slice %103 {offsets = [0, 32], sizes = [8, 32], strides = [1, 1]} : vector<8x128xf32> to vector<8x32xf32>
    %106 = vector.extract_strided_slice %103 {offsets = [0, 96], sizes = [8, 32], strides = [1, 1]} : vector<8x128xf32> to vector<8x32xf32>
    %107 = vector.extract_strided_slice %98 {offsets = [0, 64], sizes = [8, 32], strides = [1, 1]} : vector<8x128xf32> to vector<8x32xf32>
    %108 = math.tanh %107 : vector<8x32xf32>
    %109 = arith.mulf %105, %93 : vector<8x32xf32>
    %110 = arith.mulf %104, %108 : vector<8x32xf32>
    %111 = arith.addf %109, %110 : vector<8x32xf32>
    %112 = math.tanh %111 : vector<8x32xf32>
    %113 = arith.mulf %106, %112 : vector<8x32xf32>
    %114 = vector.extract_strided_slice %2 {offsets = [48, 0], sizes = [8, 128], strides = [1, 1]} : vector<64x128xf32> to vector<8x128xf32>
    %cst_21 = arith.constant dense<0.000000e+00> : vector<8x128xf32>
    %115 = tpu.matmul %113, %3, %cst_21 {dimension_numbers = #tpu.dot_dimension_numbers<[1], [0], [0], [1], [0, 0, 1, 1], [], []>} : vector<8x32xf32>, vector<32x128xf32>, vector<8x128xf32> -> vector<8x128xf32>
    %116 = arith.addf %114, %115 : vector<8x128xf32>
    %117 = arith.negf %116 : vector<8x128xf32>
    %118 = math.exp %117 : vector<8x128xf32>
    %cst_22 = arith.constant 1.000000e+00 : f32
    %119 = vector.broadcast %cst_22 : f32 to vector<8x128xf32>
    %120 = arith.addf %119, %118 : vector<8x128xf32>
    %121 = arith.divf %119, %120 : vector<8x128xf32>
    %122 = vector.extract_strided_slice %121 {offsets = [0, 0], sizes = [8, 32], strides = [1, 1]} : vector<8x128xf32> to vector<8x32xf32>
    %123 = vector.extract_strided_slice %121 {offsets = [0, 32], sizes = [8, 32], strides = [1, 1]} : vector<8x128xf32> to vector<8x32xf32>
    %124 = vector.extract_strided_slice %121 {offsets = [0, 96], sizes = [8, 32], strides = [1, 1]} : vector<8x128xf32> to vector<8x32xf32>
    %125 = vector.extract_strided_slice %116 {offsets = [0, 64], sizes = [8, 32], strides = [1, 1]} : vector<8x128xf32> to vector<8x32xf32>
    %126 = math.tanh %125 : vector<8x32xf32>
    %127 = arith.mulf %123, %111 : vector<8x32xf32>
    %128 = arith.mulf %122, %126 : vector<8x32xf32>
    %129 = arith.addf %127, %128 : vector<8x32xf32>
    %130 = math.tanh %129 : vector<8x32xf32>
    %131 = arith.mulf %124, %130 : vector<8x32xf32>
    %132 = vector.extract_strided_slice %2 {offsets = [56, 0], sizes = [8, 128], strides = [1, 1]} : vector<64x128xf32> to vector<8x128xf32>
    %cst_23 = arith.constant dense<0.000000e+00> : vector<8x128xf32>
    %133 = tpu.matmul %131, %3, %cst_23 {dimension_numbers = #tpu.dot_dimension_numbers<[1], [0], [0], [1], [0, 0, 1, 1], [], []>} : vector<8x32xf32>, vector<32x128xf32>, vector<8x128xf32> -> vector<8x128xf32>
    %134 = arith.addf %132, %133 : vector<8x128xf32>
    %135 = arith.negf %134 : vector<8x128xf32>
    %136 = math.exp %135 : vector<8x128xf32>
    %cst_24 = arith.constant 1.000000e+00 : f32
    %137 = vector.broadcast %cst_24 : f32 to vector<8x128xf32>
    %138 = arith.addf %137, %136 : vector<8x128xf32>
    %139 = arith.divf %137, %138 : vector<8x128xf32>
    %140 = vector.extract_strided_slice %139 {offsets = [0, 0], sizes = [8, 32], strides = [1, 1]} : vector<8x128xf32> to vector<8x32xf32>
    %141 = vector.extract_strided_slice %139 {offsets = [0, 32], sizes = [8, 32], strides = [1, 1]} : vector<8x128xf32> to vector<8x32xf32>
    %142 = vector.extract_strided_slice %139 {offsets = [0, 96], sizes = [8, 32], strides = [1, 1]} : vector<8x128xf32> to vector<8x32xf32>
    %143 = vector.extract_strided_slice %134 {offsets = [0, 64], sizes = [8, 32], strides = [1, 1]} : vector<8x128xf32> to vector<8x32xf32>
    %144 = math.tanh %143 : vector<8x32xf32>
    %145 = arith.mulf %141, %129 : vector<8x32xf32>
    %146 = arith.mulf %140, %144 : vector<8x32xf32>
    %147 = arith.addf %145, %146 : vector<8x32xf32>
    %148 = math.tanh %147 : vector<8x32xf32>
    %149 = arith.mulf %142, %148 : vector<8x32xf32>
    %c0_25 = arith.constant 0 : index
    %c0_26 = arith.constant 0 : index
    %150 = vector.load %arg8[%c0_25, %c0_26] : memref<8x32xf32, #tpu.memory_space<vmem>>, vector<8x32xf32>
    tpu.vector_store %arg8[%c0_25, %c0_26], %149 {strides = array<i32>} : memref<8x32xf32, #tpu.memory_space<vmem>>, vector<8x32xf32>,
    %c0_27 = arith.constant 0 : index
    %c0_28 = arith.constant 0 : index
    %151 = vector.load %arg9[%c0_27, %c0_28] : memref<8x32xf32, #tpu.memory_space<vmem>>, vector<8x32xf32>
    tpu.vector_store %arg9[%c0_27, %c0_28], %147 {strides = array<i32>} : memref<8x32xf32, #tpu.memory_space<vmem>>, vector<8x32xf32>,
    %c0_29 = arith.constant 0 : index
    %c0_30 = arith.constant 0 : index
    %152 = vector.load %arg5[%c0_29, %c0_30] : memref<32x32xf32, #tpu.memory_space<vmem>>, vector<32x32xf32>
    %c0_31 = arith.constant 0 : index
    %c0_32 = arith.constant 0 : index
    %153 = vector.load %arg6[%c0_31, %c0_32] : memref<1x32xf32, #tpu.memory_space<vmem>>, vector<1x32xf32>
    %cst_33 = arith.constant dense<0.000000e+00> : vector<8x32xf32>
    %154 = tpu.matmul %149, %152, %cst_33 {dimension_numbers = #tpu.dot_dimension_numbers<[1], [0], [0], [1], [0, 0, 1, 1], [], []>} : vector<8x32xf32>, vector<32x32xf32>, vector<8x32xf32> -> vector<8x32xf32>
    %155 = vector.broadcast %153 : vector<1x32xf32> to vector<8x32xf32>
    %156 = arith.addf %154, %155 : vector<8x32xf32>
    %cst_34 = arith.constant 0.000000e+00 : f32
    %157 = vector.broadcast %cst_34 : f32 to vector<8x32xf32>
    %158 = arith.maximumf %156, %157 : vector<8x32xf32>
    %c0_35 = arith.constant 0 : index
    %c0_36 = arith.constant 0 : index
    %159 = vector.load %arg7[%c0_35, %c0_36] : memref<8x32xf32, #tpu.memory_space<vmem>>, vector<8x32xf32>
    tpu.vector_store %arg7[%c0_35, %c0_36], %158 {strides = array<i32>} : memref<8x32xf32, #tpu.memory_space<vmem>>, vector<8x32xf32>,
    return
  }
}

</mosaic_0001>

<llo_original>
// kernel: network_forward.1
$region0: #{network_forward.1}
  #allocation0 [shape = 'u32[]', space=smem, size = 0x4, offset = 0x4, fixed_abs, tag = 'smem constant byte address 0x4 - core index']
  #allocation1 [shape = 'u32[72,128]{1,0:T(1,128)}', space=vmem, size = 0x9000, scoped, tag = 'internal scratch']
  %s0 = inlined_call_operand.vmem [shape: f32[64,16], index: 0, kind: input, shape index: {}]
  %s1 = inlined_call_operand.vmem [shape: f32[16,128], index: 1, kind: input, shape index: {}]
  %s2 = inlined_call_operand.vmem [shape: f32[32,128], index: 2, kind: input, shape index: {}]
  %s3 = inlined_call_operand.vmem [shape: f32[8,32], index: 3, kind: input, shape index: {}]
  %s4 = inlined_call_operand.vmem [shape: f32[8,32], index: 4, kind: input, shape index: {}]
  %s5 = inlined_call_operand.vmem [shape: f32[32,32], index: 5, kind: input, shape index: {}]
  %s6 = inlined_call_operand.vmem [shape: f32[1,32], index: 6, kind: input, shape index: {}]
  %s7 = inlined_call_operand.hbm [shape: f32[8,32], index: 7, kind: output, shape index: {0}]
  %s8 = inlined_call_operand.hbm [shape: f32[8,32], index: 8, kind: output, shape index: {1}]
  %s9 = inlined_call_operand.hbm [shape: f32[8,32], index: 9, kind: output, shape index: {2}]
  %10 = xla_tuple %s7, %s8, %s9
  %s11 = sld [smem:[#allocation0]]
  $region54: #{network_forward.1} parent=0
    _
  %s13 = ssub.s32 1, %s11
  %s14 = scalar_select 0, %s13, %s11
  $region1: #{network_forward.1} parent=0
    #allocation2 [shape = 'u8[4096]{0}', space=vmem, size = 0x1000, scoped, tag = 'output window, operand 0, single buffered']
    #allocation3 [shape = 's32[1]{0}', space=sflag, size = 0x4, scoped, tag = 'scoped memory for network_forward.1']
    #allocation4 [shape = 'u8[4096]{0}', space=vmem, size = 0x1000, scoped, tag = 'output window, operand 1, single buffered']
    #allocation5 [shape = 's32[1]{0}', space=sflag, size = 0x4, scoped, tag = 'scoped memory for network_forward.1']
    #allocation6 [shape = 'u8[4096]{0}', space=vmem, size = 0x1000, scoped, tag = 'output window, operand 2, single buffered']
    %15 = vsyncpa [#allocation3], 0
    %16 = vsyncpa [#allocation5], 0
    // Predicated region
    $region2: #{network_forward.1} parent=1 // pred_check
      _
    $region3: #{network_forward.1} parent=1 // pred_check_branch
      %18 = sbr.rel (0) target = $region5
    $region4: #{network_forward.1} parent=1 // pred_region
      _
    $region5: #{network_forward.1} parent=1 // pred_fallthru
      _
    // Predicated region
    $region6: #{network_forward.1} parent=1 // pred_check
      _
    $region7: #{network_forward.1} parent=1 // pred_check_branch
      %20 = sbr.rel (0) target = $region9
    $region8: #{network_forward.1} parent=1 // pred_region
      _
    $region9: #{network_forward.1} parent=1 // pred_fallthru
      _
    // Predicated region
    $region10: #{network_forward.1} parent=1 // pred_check
      _
    $region11: #{network_forward.1} parent=1 // pred_check_branch
      %22 = sbr.rel (0) target = $region13
    $region12: #{network_forward.1} parent=1 // pred_region
      _
    $region13: #{network_forward.1} parent=1 // pred_fallthru
      _
    // Predicated region
    $region14: #{network_forward.1} parent=1 // pred_check
      _
    $region15: #{network_forward.1} parent=1 // pred_check_branch
      %24 = sbr.rel (0) target = $region17
    $region16: #{network_forward.1} parent=1 // pred_region
      _
    $region17: #{network_forward.1} parent=1 // pred_fallthru
      _
    // Predicated region
    $region18: #{network_forward.1} parent=1 // pred_check
      _
    $region19: #{network_forward.1} parent=1 // pred_check_branch
      %26 = sbr.rel (0) target = $region21
    $region20: #{network_forward.1} parent=1 // pred_region
      _
    $region21: #{network_forward.1} parent=1 // pred_fallthru
      _
    // Predicated region
    $region22: #{network_forward.1} parent=1 // pred_check
      _
    $region23: #{network_forward.1} parent=1 // pred_check_branch
      %28 = sbr.rel (0) target = $region25
    $region24: #{network_forward.1} parent=1 // pred_region
      _
    $region25: #{network_forward.1} parent=1 // pred_fallthru
      _
    // Predicated region
    $region26: #{network_forward.1} parent=1 // pred_check
      _
    $region27: #{network_forward.1} parent=1 // pred_check_branch
      %30 = sbr.rel (0) target = $region29
    $region28: #{network_forward.1} parent=1 // pred_region
      _
    $region29: #{network_forward.1} parent=1 // pred_fallthru
      _
    %v31 = vld [vmem:[%s0] sm:$0xff]
    %v32 = vld [vmem:[%s0 + $0x8] sm:$0xff]
    %v33 = vld [vmem:[%s0 + $0x10] sm:$0xff]
    %v34 = vld [vmem:[%s0 + $0x18] sm:$0xff]
    %v35 = vld [vmem:[%s0 + $0x20] sm:$0xff]
    %v36 = vld [vmem:[%s0 + $0x28] sm:$0xff]
    %v37 = vld [vmem:[%s0 + $0x30] sm:$0xff]
    %v38 = vld [vmem:[%s0 + $0x38] sm:$0xff]
    %v39 = vld [vmem:[%s1] sm:$0xff]
    %v40 = vld [vmem:[%s1 + $0x8] sm:$0xff]
    %vm41 = vcmask 130048
    %v43 = vsel %vm41, %v31, 0
    %v46 = vsel %vm41, %v32, 0
    %v49 = vsel %vm41, %v33, 0
    %v52 = vsel %vm41, %v34, 0
    %v55 = vsel %vm41, %v35, 0
    %v58 = vsel %vm41, %v36, 0
    %v61 = vsel %vm41, %v37, 0
    %v64 = vsel %vm41, %v38, 0
    %66 = vmatpush.msra.mxu0 0.0
    %67 = vmatpush.msra.mxu0 0.0
    %68 = vmatpush.msra.mxu0 0.0
    %69 = vmatpush.msra.mxu0 0.0
    %70 = vmatpush.msra.mxu0 0.0
    %71 = vmatpush.msra.mxu0 0.0
    %72 = vmatpush.msra.mxu0 0.0
    %73 = vmatpush.msra.mxu0 0.0
    %74 = vmatpush.msra.mxu0 0.0
    %75 = vmatpush.msra.mxu0 0.0
    %76 = vmatpush.msra.mxu0 0.0
    %77 = vmatpush.msra.mxu0 0.0
    %78 = vmatpush.msra.mxu0 0.0
    %79 = vmatpush.msra.mxu0 0.0
    %80 = vmatpush.msra.mxu0 %v40
    %81 = vmatpush.msra.mxu0 %v39
    %82 = vmatmul.f32.gmra.mxu0 %v43
    %v83 = vpop.f32.mrf.mxu0
    %v84 = vadd.f32 0.0, %v83
    %85 = vmatmul.f32.gmra.mxu0 %v46
    %v86 = vpop.f32.mrf.mxu0
    %v87 = vadd.f32 0.0, %v86
    %88 = vmatmul.f32.gmra.mxu0 %v49
    %v89 = vpop.f32.mrf.mxu0
    %v90 = vadd.f32 0.0, %v89
    %91 = vmatmul.f32.gmra.mxu0 %v52
    %v92 = vpop.f32.mrf.mxu0
    %v93 = vadd.f32 0.0, %v92
    %94 = vmatmul.f32.gmra.mxu0 %v55
    %v95 = vpop.f32.mrf.mxu0
    %v96 = vadd.f32 0.0, %v95
    %97 = vmatmul.f32.gmra.mxu0 %v58
    %v98 = vpop.f32.mrf.mxu0
    %v99 = vadd.f32 0.0, %v98
    %100 = vmatmul.f32.gmra.mxu0 %v61
    %v101 = vpop.f32.mrf.mxu0
    %v102 = vadd.f32 0.0, %v101
    %103 = vmatmul.f32.gmra.mxu0 %v64
    %v104 = vpop.f32.mrf.mxu0
    %v105 = vadd.f32 0.0, %v104
    %106 = vdwg.mxu0
    %v107 = vld [vmem:[%s2] sm:$0xff]
    %v108 = vld [vmem:[%s2 + $0x8] sm:$0xff]
    %v109 = vld [vmem:[%s2 + $0x10] sm:$0xff]
    %v110 = vld [vmem:[%s2 + $0x18] sm:$0xff]
    %v111 = vld [vmem:[%s3] sm:$0xff]
    %v112 = vld [vmem:[%s4] sm:$0xff]
    %vm113 = vcmask 261120
    %v115 = vsel %vm113, %v111, 0
    %117 = vmatpush.msra.mxu0 0.0
    %118 = vmatpush.msra.mxu0 0.0
    %119 = vmatpush.msra.mxu0 0.0
    %120 = vmatpush.msra.mxu0 0.0
    %121 = vmatpush.msra.mxu0 0.0
    %122 = vmatpush.msra.mxu0 0.0
    %123 = vmatpush.msra.mxu0 0.0
    %124 = vmatpush.msra.mxu0 0.0
    %125 = vmatpush.msra.mxu0 0.0
    %126 = vmatpush.msra.mxu0 0.0
    %127 = vmatpush.msra.mxu0 0.0
    %128 = vmatpush.msra.mxu0 0.0
    %129 = vmatpush.msra.mxu0 %v110
    %130 = vmatpush.msra.mxu0 %v109
    %131 = vmatpush.msra.mxu0 %v108
    %132 = vmatpush.msra.mxu0 %v107
    %133 = vmatmul.f32.gmra.mxu0 %v115
    %v134 = vpop.f32.mrf.mxu0
    %v135 = vadd.f32 0.0, %v134
    %136 = vdwg.mxu0
    %v137 = vadd.f32 %v84, %v135
    %v138 = vxor.u32 %v137, 2147483648
    %v139 = vmul.f32 %v138, 1.442695
    %v140 = vpow.pop %v139
    %v141 = vadd.f32 %v140, 1.0
    %v142 = vrcp.pop %v141
    %v143 = vmul.f32 %v141, %v142
    %v144 = vsub.f32 1.0, %v143
    %v145 = vmul.f32 %v142, %v144
    %v146 = vadd.f32 %v142, %v145
    %vm147 = vweird.f32 %v141
    %vm148 = vweird.f32 %v142
    %vm149 = vmor %vm147, %vm148
    %v150 = vsel %vm149, %v142, %v146
    %v151 = vand.u32 2147483647, %v141
    %vm152 = vcmp.eq.f32.partialorder %v151, 8.507059e+37
    %v153 = vand.u32 %v141, 2147483648
    %v154 = vor.u32 1.1754944e-38, %v153
    %v155 = vsel %vm152, %v154, %v150
    %v156 = vmul.f32 1.0, %v155
    %v157 = vtanh.pop %v137
    %159 = vrot.lane.b32.xlu0 %v112, 32
    %v160 = vpop.permute.xlu0 %159
    %v162 = vmul.f32 %v156, %v160
    %164 = vrot.lane.b32.xlu0 %v157, 64
    %v165 = vpop.permute.xlu0 %164
    %v167 = vmul.f32 %v156, %v165
    %169 = vrot.lane.b32.xlu0 %v167, 32
    %v170 = vpop.permute.xlu0 %169
    %v172 = vadd.f32 %v162, %v170
    %v173 = vtanh.pop %v172
    %175 = vrot.lane.b32.xlu0 %v173, 64
    %v176 = vpop.permute.xlu0 %175
    %v178 = vmul.f32 %v156, %v176
    %180 = vrot.lane.b32.xlu0 %v178, 32
    %v181 = vpop.permute.xlu0 %180
    %v182 = vsel %vm113, %v181, 0
    %184 = vmatpush.msra.mxu0 0.0
    %185 = vmatpush.msra.mxu0 0.0
    %186 = vmatpush.msra.mxu0 0.0
    %187 = vmatpush.msra.mxu0 0.0
    %188 = vmatpush.msra.mxu0 0.0
    %189 = vmatpush.msra.mxu0 0.0
    %190 = vmatpush.msra.mxu0 0.0
    %191 = vmatpush.msra.mxu0 0.0
    %192 = vmatpush.msra.mxu0 0.0
    %193 = vmatpush.msra.mxu0 0.0
    %194 = vmatpush.msra.mxu0 0.0
    %195 = vmatpush.msra.mxu0 0.0
    %196 = vmatpush.msra.mxu0 %v110
    %197 = vmatpush.msra.mxu0 %v109
    %198 = vmatpush.msra.mxu0 %v108
    %199 = vmatpush.msra.mxu0 %v107
    %200 = vmatmul.f32.gmra.mxu0 %v182
    %v201 = vpop.f32.mrf.mxu0
    %v202 = vadd.f32 0.0, %v201
    %203 = vdwg.mxu0
    %v204 = vadd.f32 %v87, %v202
    %v205 = vxor.u32 %v204, 2147483648
    %v206 = vmul.f32 %v205, 1.442695
    %v207 = vpow.pop %v206
    %v208 = vadd.f32 %v207, 1.0
    %v209 = vrcp.pop %v208
    %v210 = vmul.f32 %v208, %v209
    %v211 = vsub.f32 1.0, %v210
    %v212 = vmul.f32 %v209, %v211
    %v213 = vadd.f32 %v209, %v212
    %vm214 = vweird.f32 %v208
    %vm215 = vweird.f32 %v209
    %vm216 = vmor %vm214, %vm215
    %v217 = vsel %vm216, %v209, %v213
    %v218 = vand.u32 2147483647, %v208
    %vm219 = vcmp.eq.f32.partialorder %v218, 8.507059e+37
    %v220 = vand.u32 %v208, 2147483648
    %v221 = vor.u32 1.1754944e-38, %v220
    %v222 = vsel %vm219, %v221, %v217
    %v223 = vmul.f32 1.0, %v222
    %v224 = vtanh.pop %v204
    %v225 = vmul.f32 %v223, %v172
    %227 = vrot.lane.b32.xlu0 %v224, 64
    %v228 = vpop.permute.xlu0 %227
    %v230 = vmul.f32 %v223, %v228
    %232 = vrot.lane.b32.xlu0 %v230, 32
    %v233 = vpop.permute.xlu0 %232
    %v235 = vadd.f32 %v225, %v233
    %v236 = vtanh.pop %v235
    %238 = vrot.lane.b32.xlu0 %v236, 64
    %v239 = vpop.permute.xlu0 %238
    %v241 = vmul.f32 %v223, %v239
    %243 = vrot.lane.b32.xlu0 %v241, 32
    %v244 = vpop.permute.xlu0 %243
    %v245 = vsel %vm113, %v244, 0
    %247 = vmatpush.msra.mxu0 0.0
    %248 = vmatpush.msra.mxu0 0.0
    %249 = vmatpush.msra.mxu0 0.0
    %250 = vmatpush.msra.mxu0 0.0
    %251 = vmatpush.msra.mxu0 0.0
    %252 = vmatpush.msra.mxu0 0.0
    %253 = vmatpush.msra.mxu0 0.0
    %254 = vmatpush.msra.mxu0 0.0
    %255 = vmatpush.msra.mxu0 0.0
    %256 = vmatpush.msra.mxu0 0.0
    %257 = vmatpush.msra.mxu0 0.0
    %258 = vmatpush.msra.mxu0 0.0
    %259 = vmatpush.msra.mxu0 %v110
    %260 = vmatpush.msra.mxu0 %v109
    %261 = vmatpush.msra.mxu0 %v108
    %262 = vmatpush.msra.mxu0 %v107
    %263 = vmatmul.f32.gmra.mxu0 %v245
    %v264 = vpop.f32.mrf.mxu0
    %v265 = vadd.f32 0.0, %v264
    %266 = vdwg.mxu0
    %v267 = vadd.f32 %v90, %v265
    %v268 = vxor.u32 %v267, 2147483648
    %v269 = vmul.f32 %v268, 1.442695
    %v270 = vpow.pop %v269
    %v271 = vadd.f32 %v270, 1.0
    %v272 = vrcp.pop %v271
    %v273 = vmul.f32 %v271, %v272
    %v274 = vsub.f32 1.0, %v273
    %v275 = vmul.f32 %v272, %v274
    %v276 = vadd.f32 %v272, %v275
    %vm277 = vweird.f32 %v271
    %vm278 = vweird.f32 %v272
    %vm279 = vmor %vm277, %vm278
    %v280 = vsel %vm279, %v272, %v276
    %v281 = vand.u32 2147483647, %v271
    %vm282 = vcmp.eq.f32.partialorder %v281, 8.507059e+37
    %v283 = vand.u32 %v271, 2147483648
    %v284 = vor.u32 1.1754944e-38, %v283
    %v285 = vsel %vm282, %v284, %v280
    %v286 = vmul.f32 1.0, %v285
    %v287 = vtanh.pop %v267
    %v288 = vmul.f32 %v286, %v235
    %290 = vrot.lane.b32.xlu0 %v287, 64
    %v291 = vpop.permute.xlu0 %290
    %v293 = vmul.f32 %v286, %v291
    %295 = vrot.lane.b32.xlu0 %v293, 32
    %v296 = vpop.permute.xlu0 %295
    %v298 = vadd.f32 %v288, %v296
    %v299 = vtanh.pop %v298
    %301 = vrot.lane.b32.xlu0 %v299, 64
    %v302 = vpop.permute.xlu0 %301
    %v304 = vmul.f32 %v286, %v302
    %306 = vrot.lane.b32.xlu0 %v304, 32
    %v307 = vpop.permute.xlu0 %306
    %v308 = vsel %vm113, %v307, 0
    %310 = vmatpush.msra.mxu0 0.0
    %311 = vmatpush.msra.mxu0 0.0
    %312 = vmatpush.msra.mxu0 0.0
    %313 = vmatpush.msra.mxu0 0.0
    %314 = vmatpush.msra.mxu0 0.0
    %315 = vmatpush.msra.mxu0 0.0
    %316 = vmatpush.msra.mxu0 0.0
    %317 = vmatpush.msra.mxu0 0.0
    %318 = vmatpush.msra.mxu0 0.0
    %319 = vmatpush.msra.mxu0 0.0
    %320 = vmatpush.msra.mxu0 0.0
    %321 = vmatpush.msra.mxu0 0.0
    %322 = vmatpush.msra.mxu0 %v110
    %323 = vmatpush.msra.mxu0 %v109
    %324 = vmatpush.msra.mxu0 %v108
    %325 = vmatpush.msra.mxu0 %v107
    %326 = vmatmul.f32.gmra.mxu0 %v308
    %v327 = vpop.f32.mrf.mxu0
    %v328 = vadd.f32 0.0, %v327
    %329 = vdwg.mxu0
    %v330 = vadd.f32 %v93, %v328
    %v331 = vxor.u32 %v330, 2147483648
    %v332 = vmul.f32 %v331, 1.442695
    %v333 = vpow.pop %v332
    %v334 = vadd.f32 %v333, 1.0
    %v335 = vrcp.pop %v334
    %v336 = vmul.f32 %v334, %v335
    %v337 = vsub.f32 1.0, %v336
    %v338 = vmul.f32 %v335, %v337
    %v339 = vadd.f32 %v335, %v338
    %vm340 = vweird.f32 %v334
    %vm341 = vweird.f32 %v335
    %vm342 = vmor %vm340, %vm341
    %v343 = vsel %vm342, %v335, %v339
    %v344 = vand.u32 2147483647, %v334
    %vm345 = vcmp.eq.f32.partialorder %v344, 8.507059e+37
    %v346 = vand.u32 %v334, 2147483648
    %v347 = vor.u32 1.1754944e-38, %v346
    %v348 = vsel %vm345, %v347, %v343
    %v349 = vmul.f32 1.0, %v348
    %v350 = vtanh.pop %v330
    %v351 = vmul.f32 %v349, %v298
    %353 = vrot.lane.b32.xlu0 %v350, 64
    %v354 = vpop.permute.xlu0 %353
    %v356 = vmul.f32 %v349, %v354
    %358 = vrot.lane.b32.xlu0 %v356, 32
    %v359 = vpop.permute.xlu0 %358
    %v361 = vadd.f32 %v351, %v359
    %v362 = vtanh.pop %v361
    %364 = vrot.lane.b32.xlu0 %v362, 64
    %v365 = vpop.permute.xlu0 %364
    %v367 = vmul.f32 %v349, %v365
    %369 = vrot.lane.b32.xlu0 %v367, 32
    %v370 = vpop.permute.xlu0 %369
    %v371 = vsel %vm113, %v370, 0
    %373 = vmatpush.msra.mxu0 0.0
    %374 = vmatpush.msra.mxu0 0.0
    %375 = vmatpush.msra.mxu0 0.0
    %376 = vmatpush.msra.mxu0 0.0
    %377 = vmatpush.msra.mxu0 0.0
    %378 = vmatpush.msra.mxu0 0.0
    %379 = vmatpush.msra.mxu0 0.0
    %380 = vmatpush.msra.mxu0 0.0
    %381 = vmatpush.msra.mxu0 0.0
    %382 = vmatpush.msra.mxu0 0.0
    %383 = vmatpush.msra.mxu0 0.0
    %384 = vmatpush.msra.mxu0 0.0
    %385 = vmatpush.msra.mxu0 %v110
    %386 = vmatpush.msra.mxu0 %v109
    %387 = vmatpush.msra.mxu0 %v108
    %388 = vmatpush.msra.mxu0 %v107
    %389 = vmatmul.f32.gmra.mxu0 %v371
    %v390 = vpop.f32.mrf.mxu0
    %v391 = vadd.f32 0.0, %v390
    %392 = vdwg.mxu0
    %v393 = vadd.f32 %v96, %v391
    %v394 = vxor.u32 %v393, 2147483648
    %v395 = vmul.f32 %v394, 1.442695
    %v396 = vpow.pop %v395
    %v397 = vadd.f32 %v396, 1.0
    %v398 = vrcp.pop %v397
    %v399 = vmul.f32 %v397, %v398
    %v400 = vsub.f32 1.0, %v399
    %v401 = vmul.f32 %v398, %v400
    %v402 = vadd.f32 %v398, %v401
    %vm403 = vweird.f32 %v397
    %vm404 = vweird.f32 %v398
    %vm405 = vmor %vm403, %vm404
    %v406 = vsel %vm405, %v398, %v402
    %v407 = vand.u32 2147483647, %v397
    %vm408 = vcmp.eq.f32.partialorder %v407, 8.507059e+37
    %v409 = vand.u32 %v397, 2147483648
    %v410 = vor.u32 1.1754944e-38, %v409
    %v411 = vsel %vm408, %v410, %v406
    %v412 = vmul.f32 1.0, %v411
    %v413 = vtanh.pop %v393
    %v414 = vmul.f32 %v412, %v361
    %416 = vrot.lane.b32.xlu0 %v413, 64
    %v417 = vpop.permute.xlu0 %416
    %v419 = vmul.f32 %v412, %v417
    %421 = vrot.lane.b32.xlu0 %v419, 32
    %v422 = vpop.permute.xlu0 %421
    %v424 = vadd.f32 %v414, %v422
    %v425 = vtanh.pop %v424
    %427 = vrot.lane.b32.xlu0 %v425, 64
    %v428 = vpop.permute.xlu0 %427
    %v430 = vmul.f32 %v412, %v428
    %432 = vrot.lane.b32.xlu0 %v430, 32
    %v433 = vpop.permute.xlu0 %432
    %v434 = vsel %vm113, %v433, 0
    %436 = vmatpush.msra.mxu0 0.0
    %437 = vmatpush.msra.mxu0 0.0
    %438 = vmatpush.msra.mxu0 0.0
    %439 = vmatpush.msra.mxu0 0.0
    %440 = vmatpush.msra.mxu0 0.0
    %441 = vmatpush.msra.mxu0 0.0
    %442 = vmatpush.msra.mxu0 0.0
    %443 = vmatpush.msra.mxu0 0.0
    %444 = vmatpush.msra.mxu0 0.0
    %445 = vmatpush.msra.mxu0 0.0
    %446 = vmatpush.msra.mxu0 0.0
    %447 = vmatpush.msra.mxu0 0.0
    %448 = vmatpush.msra.mxu0 %v110
    %449 = vmatpush.msra.mxu0 %v109
    %450 = vmatpush.msra.mxu0 %v108
    %451 = vmatpush.msra.mxu0 %v107
    %452 = vmatmul.f32.gmra.mxu0 %v434
    %v453 = vpop.f32.mrf.mxu0
    %v454 = vadd.f32 0.0, %v453
    %455 = vdwg.mxu0
    %v456 = vadd.f32 %v99, %v454
    %v457 = vxor.u32 %v456, 2147483648
    %v458 = vmul.f32 %v457, 1.442695
    %v459 = vpow.pop %v458
    %v460 = vadd.f32 %v459, 1.0
    %v461 = vrcp.pop %v460
    %v462 = vmul.f32 %v460, %v461
    %v463 = vsub.f32 1.0, %v462
    %v464 = vmul.f32 %v461, %v463
    %v465 = vadd.f32 %v461, %v464
    %vm466 = vweird.f32 %v460
    %vm467 = vweird.f32 %v461
    %vm468 = vmor %vm466, %vm467
    %v469 = vsel %vm468, %v461, %v465
    %v470 = vand.u32 2147483647, %v460
    %vm471 = vcmp.eq.f32.partialorder %v470, 8.507059e+37
    %v472 = vand.u32 %v460, 2147483648
    %v473 = vor.u32 1.1754944e-38, %v472
    %v474 = vsel %vm471, %v473, %v469
    %v475 = vmul.f32 1.0, %v474
    %v476 = vtanh.pop %v456
    %v477 = vmul.f32 %v475, %v424
    %479 = vrot.lane.b32.xlu0 %v476, 64
    %v480 = vpop.permute.xlu0 %479
    %v482 = vmul.f32 %v475, %v480
    %484 = vrot.lane.b32.xlu0 %v482, 32
    %v485 = vpop.permute.xlu0 %484
    %v487 = vadd.f32 %v477, %v485
    %v488 = vtanh.pop %v487
    %490 = vrot.lane.b32.xlu0 %v488, 64
    %v491 = vpop.permute.xlu0 %490
    %v493 = vmul.f32 %v475, %v491
    %495 = vrot.lane.b32.xlu0 %v493, 32
    %v496 = vpop.permute.xlu0 %495
    %v497 = vsel %vm113, %v496, 0
    %499 = vmatpush.msra.mxu0 0.0
    %500 = vmatpush.msra.mxu0 0.0
    %501 = vmatpush.msra.mxu0 0.0
    %502 = vmatpush.msra.mxu0 0.0
    %503 = vmatpush.msra.mxu0 0.0
    %504 = vmatpush.msra.mxu0 0.0
    %505 = vmatpush.msra.mxu0 0.0
    %506 = vmatpush.msra.mxu0 0.0
    %507 = vmatpush.msra.mxu0 0.0
    %508 = vmatpush.msra.mxu0 0.0
    %509 = vmatpush.msra.mxu0 0.0
    %510 = vmatpush.msra.mxu0 0.0
    %511 = vmatpush.msra.mxu0 %v110
    %512 = vmatpush.msra.mxu0 %v109
    %513 = vmatpush.msra.mxu0 %v108
    %514 = vmatpush.msra.mxu0 %v107
    %515 = vmatmul.f32.gmra.mxu0 %v497
    %v516 = vpop.f32.mrf.mxu0
    %v517 = vadd.f32 0.0, %v516
    %518 = vdwg.mxu0
    %v519 = vadd.f32 %v102, %v517
    %v520 = vxor.u32 %v519, 2147483648
    %v521 = vmul.f32 %v520, 1.442695
    %v522 = vpow.pop %v521
    %v523 = vadd.f32 %v522, 1.0
    %v524 = vrcp.pop %v523
    %v525 = vmul.f32 %v523, %v524
    %v526 = vsub.f32 1.0, %v525
    %v527 = vmul.f32 %v524, %v526
    %v528 = vadd.f32 %v524, %v527
    %vm529 = vweird.f32 %v523
    %vm530 = vweird.f32 %v524
    %vm531 = vmor %vm529, %vm530
    %v532 = vsel %vm531, %v524, %v528
    %v533 = vand.u32 2147483647, %v523
    %vm534 = vcmp.eq.f32.partialorder %v533, 8.507059e+37
    %v535 = vand.u32 %v523, 2147483648
    %v536 = vor.u32 1.1754944e-38, %v535
    %v537 = vsel %vm534, %v536, %v532
    %v538 = vmul.f32 1.0, %v537
    %v539 = vtanh.pop %v519
    %v540 = vmul.f32 %v538, %v487
    %542 = vrot.lane.b32.xlu0 %v539, 64
    %v543 = vpop.permute.xlu0 %542
    %v545 = vmul.f32 %v538, %v543
    %547 = vrot.lane.b32.xlu0 %v545, 32
    %v548 = vpop.permute.xlu0 %547
    %v550 = vadd.f32 %v540, %v548
    %v551 = vtanh.pop %v550
    %553 = vrot.lane.b32.xlu0 %v551, 64
    %v554 = vpop.permute.xlu0 %553
    %v556 = vmul.f32 %v538, %v554
    %558 = vrot.lane.b32.xlu0 %v556, 32
    %v559 = vpop.permute.xlu0 %558
    %v560 = vsel %vm113, %v559, 0
    %562 = vmatpush.msra.mxu0 0.0
    %563 = vmatpush.msra.mxu0 0.0
    %564 = vmatpush.msra.mxu0 0.0
    %565 = vmatpush.msra.mxu0 0.0
    %566 = vmatpush.msra.mxu0 0.0
    %567 = vmatpush.msra.mxu0 0.0
    %568 = vmatpush.msra.mxu0 0.0
    %569 = vmatpush.msra.mxu0 0.0
    %570 = vmatpush.msra.mxu0 0.0
    %571 = vmatpush.msra.mxu0 0.0
    %572 = vmatpush.msra.mxu0 0.0
    %573 = vmatpush.msra.mxu0 0.0
    %574 = vmatpush.msra.mxu0 %v110
    %575 = vmatpush.msra.mxu0 %v109
    %576 = vmatpush.msra.mxu0 %v108
    %577 = vmatpush.msra.mxu0 %v107
    %578 = vmatmul.f32.gmra.mxu0 %v560
    %v579 = vpop.f32.mrf.mxu0
    %v580 = vadd.f32 0.0, %v579
    %581 = vdwg.mxu0
    %v582 = vadd.f32 %v105, %v580
    %v583 = vxor.u32 %v582, 2147483648
    %v584 = vmul.f32 %v583, 1.442695
    %v585 = vpow.pop %v584
    %v586 = vadd.f32 %v585, 1.0
    %v587 = vrcp.pop %v586
    %v588 = vmul.f32 %v586, %v587
    %v589 = vsub.f32 1.0, %v588
    %v590 = vmul.f32 %v587, %v589
    %v591 = vadd.f32 %v587, %v590
    %vm592 = vweird.f32 %v586
    %vm593 = vweird.f32 %v587
    %vm594 = vmor %vm592, %vm593
    %v595 = vsel %vm594, %v587, %v591
    %v596 = vand.u32 2147483647, %v586
    %vm597 = vcmp.eq.f32.partialorder %v596, 8.507059e+37
    %v598 = vand.u32 %v586, 2147483648
    %v599 = vor.u32 1.1754944e-38, %v598
    %v600 = vsel %vm597, %v599, %v595
    %v601 = vmul.f32 1.0, %v600
    %v602 = vtanh.pop %v582
    %v603 = vmul.f32 %v601, %v550
    %605 = vrot.lane.b32.xlu0 %v602, 64
    %v606 = vpop.permute.xlu0 %605
    %v608 = vmul.f32 %v601, %v606
    %610 = vrot.lane.b32.xlu0 %v608, 32
    %v611 = vpop.permute.xlu0 %610
    %v613 = vadd.f32 %v603, %v611
    %v614 = vtanh.pop %v613
    %616 = vrot.lane.b32.xlu0 %v614, 64
    %v617 = vpop.permute.xlu0 %616
    %v619 = vmul.f32 %v601, %v617
    %621 = vrot.lane.b32.xlu0 %v619, 32
    %v622 = vpop.permute.xlu0 %621
    %624 = vst.msk [vmem:[#allocation4] sm:$0xff] %vm113, %v622
    %626 = vrot.lane.b32.xlu0 %v613, 96
    %v627 = vpop.permute.xlu0 %626
    %629 = vst.msk [vmem:[#allocation6] sm:$0xff] %vm113, %v627
    %v630 = vld [vmem:[%s5] sm:$0xff]
    %v631 = vld [vmem:[%s5 + $0x8] sm:$0xff]
    %v632 = vld [vmem:[%s5 + $0x10] sm:$0xff]
    %v633 = vld [vmem:[%s5 + $0x18] sm:$0xff]
    %v634 = vld [vmem:[%s6] sm:$0x1]
    %v636 = vperm.slane %v634, 0
    %v638 = vsel %vm113, %v622, 0
    %640 = vmatpush.msra.mxu0 0.0
    %641 = vmatpush.msra.mxu0 0.0
    %642 = vmatpush.msra.mxu0 0.0
    %643 = vmatpush.msra.mxu0 0.0
    %644 = vmatpush.msra.mxu0 0.0
    %645 = vmatpush.msra.mxu0 0.0
    %646 = vmatpush.msra.mxu0 0.0
    %647 = vmatpush.msra.mxu0 0.0
    %648 = vmatpush.msra.mxu0 0.0
    %649 = vmatpush.msra.mxu0 0.0
    %650 = vmatpush.msra.mxu0 0.0
    %651 = vmatpush.msra.mxu0 0.0
    %652 = vmatpush.msra.mxu0 %v633
    %653 = vmatpush.msra.mxu0 %v632
    %654 = vmatpush.msra.mxu0 %v631
    %655 = vmatpush.msra.mxu0 %v630
    %656 = vmatmul.f32.gmra.mxu0 %v638
    %v657 = vpop.f32.mrf.mxu0
    %v658 = vadd.f32 %v636, %v657
    %659 = vdwg.mxu0
    %v660 = vmax.f32 %v658, 0.0
    %661 = vst.msk [vmem:[#allocation2] sm:$0xff] %vm113, %v660
    // Predicated region
    $region30: #{network_forward.1} parent=1 // pred_check
      _
    $region31: #{network_forward.1} parent=1 // pred_check_branch
      %663 = sbr.rel (0) target = $region33
    $region32: #{network_forward.1} parent=1 // pred_region
      %665 = vsyncadd [#allocation3], 0
      %s667 = sshll.u32 [#allocation2], 4
      %s668 = int_to_ptr.vmem [resolvable:$true] %s667
      %s669 = sshll.u32 %s7, 4
      %s670 = int_to_ptr.hbm [resolvable:$true] %s669
      %672 = dma.vmem_to_hbm [thread:$0]  %s668, 128, %s670, [#allocation3]
    $region33: #{network_forward.1} parent=1 // pred_fallthru
      _
    // Predicated region
    $region34: #{network_forward.1} parent=1 // pred_check
      _
    $region35: #{network_forward.1} parent=1 // pred_check_branch
      %674 = sbr.rel (0) target = $region37
    $region36: #{network_forward.1} parent=1 // pred_region
      %676 = vsyncadd [#allocation5], 0
      %s678 = sshll.u32 [#allocation4], 4
      %s679 = int_to_ptr.vmem [resolvable:$true] %s678
      %s680 = sshll.u32 %s8, 4
      %s681 = int_to_ptr.hbm [resolvable:$true] %s680
      %683 = dma.vmem_to_hbm [thread:$0]  %s679, 128, %s681, [#allocation5]
    $region37: #{network_forward.1} parent=1 // pred_fallthru
      _
    // Predicated region
    $region38: #{network_forward.1} parent=1 // pred_check
      _
    $region39: #{network_forward.1} parent=1 // pred_check_branch
      %685 = sbr.rel (0) target = $region41
    $region40: #{network_forward.1} parent=1 // pred_region
      %687 = vsyncadd [#allocation5], 0
      %s689 = sshll.u32 [#allocation6], 4
      %s690 = int_to_ptr.vmem [resolvable:$true] %s689
      %s691 = sshll.u32 %s9, 4
      %s692 = int_to_ptr.hbm [resolvable:$true] %s691
      %694 = dma.vmem_to_hbm [thread:$0]  %s690, 128, %s692, [#allocation5]
    $region41: #{network_forward.1} parent=1 // pred_fallthru
      _
    // Predicated region
    $region42: #{network_forward.1} parent=1 // pred_check
      _
    $region43: #{network_forward.1} parent=1 // pred_check_branch
      %696 = sbr.rel (0) target = $region45
    $region44: #{network_forward.1} parent=1 // pred_region
      %698 = dma.done [#allocation3], 128
    $region45: #{network_forward.1} parent=1 // pred_fallthru
      _
    // Predicated region
    $region46: #{network_forward.1} parent=1 // pred_check
      _
    $region47: #{network_forward.1} parent=1 // pred_check_branch
      %700 = sbr.rel (0) target = $region49
    $region48: #{network_forward.1} parent=1 // pred_region
      %702 = dma.done [#allocation5], 128
    $region49: #{network_forward.1} parent=1 // pred_fallthru
      _
    // Predicated region
    $region50: #{network_forward.1} parent=1 // pred_check
      _
    $region51: #{network_forward.1} parent=1 // pred_check_branch
      %704 = sbr.rel (0) target = $region53
    $region52: #{network_forward.1} parent=1 // pred_region
      %706 = dma.done [#allocation5], 128
    $region53: #{network_forward.1} parent=1 // pred_fallthru
      _
    %707 = vsyncpa [#allocation3], 1
    %708 = vsyncpa [#allocation5], 1

</llo_original>
